<compile_context>
chip_gen: v5e
topology: v5e:2x2
jax: 0.10.0
libtpu: 0.0.40
codegen_flags: <defaults>
</compile_context>

<pallas_src>
import jax
import jax.numpy as jnp
from jax.experimental import pallas as pl
from jax.experimental.pallas import tpu as pltpu


# -----------------------------------------------------------------------------
# Fused multi-layer GRU sequence kernel (optionally with the regression head)
# -----------------------------------------------------------------------------
def _make_fused_gru_kernel(num_layers, seq_len, with_head):
    n_w = 5 * num_layers

    def kernel(*refs):
        # ---- parse refs: inputs..., outputs..., scratch ----
        x_ref = refs[0]                           # (L, N, In)   VMEM-resident
        h0_ref = refs[1]                          # (num_layers, N, H)
        w_refs = refs[2:2 + n_w]                  # per layer: wih, whh, b_rz, b_in, b_hn
        pos = 2 + n_w
        if with_head:
            w1t_ref, b1_ref, w2_ref, b2_ref = refs[pos:pos + 4]
            pos += 4
        out_ref = refs[pos]                       # (L, N, H)
        hfin_ref = refs[pos + 1]                  # (num_layers, N, H)
        if with_head:
            pred_ref = refs[pos + 2]              # (L*N, 1)
            head_buf = refs[pos + 3]              # VMEM scratch (L*N, H) f32

        N = x_ref.shape[1]

        # Weights / biases are tiny and VMEM-resident: load once, reuse every timestep.
        wparams = []
        for layer in range(num_layers):
            wih_ref, whh_ref, brz_ref, bin_ref, bhn_ref = w_refs[5 * layer:5 * layer + 5]
            wparams.append((wih_ref[...], whh_ref[...], brz_ref[...],
                            bin_ref[...], bhn_ref[...]))

        h_init = tuple(h0_ref[l].astype(jnp.float32) for l in range(num_layers))

        def step(t, hs):
            x = x_ref[t].astype(jnp.float32)      # (N, In)
            new_hs = []
            # All stacked layers fused per timestep; layer-(l) output feeds layer-(l+1)
            # directly from registers (no HBM / VMEM round trip between layers).
            for layer in range(num_layers):
                wih, whh, brz, b_in, b_hn = wparams[layer]
                h = hs[layer]                     # (N, H) f32
                H = whh.shape[0]
                # Merged gate matmuls: one MXU push per operand (gate order r|z|n).
                # TODO(synk): cast dot operands to bf16 at large H (keep f32 accumulation).
                gi = jnp.dot(x, wih, preferred_element_type=jnp.float32)   # (N, 3H)
                gh = jnp.dot(h, whh, preferred_element_type=jnp.float32)   # (N, 3H)
                # Single sigmoid over the concatenated r|z slab; r/z biases pre-summed.
                rz = jax.nn.sigmoid(gi[:, :2 * H] + gh[:, :2 * H] + brz)
                r, z = rz[:, :H], rz[:, H:]
                n = jnp.tanh(gi[:, 2 * H:] + b_in + r * (gh[:, 2 * H:] + b_hn))
                h = (1.0 - z) * n + z * h
                new_hs.append(h)
                x = h
            out_ref[t] = x.astype(out_ref.dtype)
            if with_head:
                # Stage this timestep's output into the flat (L*N, H) slab so the head
                # can run as ONE batched dot after the recurrence.
                head_buf[pl.ds(t * N, N), :] = x
            return tuple(new_hs)

        h_fin = jax.lax.fori_loop(0, seq_len, step, h_init, unroll=True)

        # Final hidden state written ONCE (previously copied every timestep).
        for layer in range(num_layers):
            hfin_ref[layer] = h_fin[layer].astype(hfin_ref.dtype)

        if with_head:
            # Fused edge_regression, hoisted out of the per-timestep path:
            # one (L*N, In) x (In, In//2) MXU dot, then the width-1 Linear(In//2, 1) as a
            # VPU multiply + lane reduction, ONE store.
            hm = jnp.dot(head_buf[...], w1t_ref[...],
                         preferred_element_type=jnp.float32) + b1_ref[...]
            p = jnp.sum(hm * w2_ref[...], axis=-1, keepdims=True) + b2_ref[...]
            pred_ref[...] = p.astype(pred_ref.dtype)

    return kernel


def gru_sequence(layer_params, x_seq, h0, head_params=None):
    """Multi-layer GRU over a sequence in a single (grid-less) pallas_call.

    x_seq: (L, N, In); h0: (num_layers, N, H).
    Returns (output (L, N, H), hidden (num_layers, N, H)[, pred (L, N, 1)]).
    """
    L, N, In = x_seq.shape
    num_layers, _, H = h0.shape
    with_head = head_params is not None

    inputs = [x_seq, h0]
    for p in layer_params:
        inputs.extend(p)
    if with_head:
        inputs.extend(head_params)

    vmem_spec = pl.BlockSpec(memory_space=pltpu.MemorySpace.VMEM)

    out_shapes = [jax.ShapeDtypeStruct((L, N, H), x_seq.dtype),
                  jax.ShapeDtypeStruct((num_layers, N, H), x_seq.dtype)]
    if with_head:
        # Flat (L*N, 1) in-kernel; reshaped to (L, N, 1) on the host (free) to avoid an
        # in-kernel cross-tile relayout.
        out_shapes.append(jax.ShapeDtypeStruct((L * N, 1), x_seq.dtype))

    scratch = []
    if with_head:
        scratch.append(pltpu.VMEM((L * N, H), jnp.float32))

    outs = pl.pallas_call(
        _make_fused_gru_kernel(num_layers, L, with_head),
        out_shape=tuple(out_shapes),
        in_specs=[vmem_spec] * len(inputs),
        out_specs=tuple([vmem_spec] * len(out_shapes)),
        scratch_shapes=scratch,
        # TODO(synk): pltpu.CompilerParams(vmem_limit_bytes=...) + bf16 weights once the
        # resident footprint approaches the scoped-VMEM default (v5e 16 MiB / v7x 64 MiB).
    )(*inputs)

    if with_head:
        out, hfin, pred_flat = outs
        return out, hfin, pred_flat.reshape(L, N, 1)
    out, hfin = outs
    return out, hfin


# -----------------------------------------------------------------------------
# Pure-JAX reference (for correctness checking)
# -----------------------------------------------------------------------------
def gru_sequence_ref(layer_params, x_seq, h0, head_params=None):
    P = jax.lax.Precision.HIGHEST
    h_all = [h0[l] for l in range(h0.shape[0])]
    outs, preds = [], []
    for t in range(x_seq.shape[0]):
        x = x_seq[t]
        for l, (wih, whh, b_rz, b_in, b_hn) in enumerate(layer_params):
            H = whh.shape[0]
            h = h_all[l]
            gi = jnp.dot(x, wih, precision=P)
            gh = jnp.dot(h, whh, precision=P)
            rz = jax.nn.sigmoid(gi[:, :2 * H] + gh[:, :2 * H] + b_rz)
            r, z = rz[:, :H], rz[:, H:]
            n = jnp.tanh(gi[:, 2 * H:] + b_in + r * (gh[:, 2 * H:] + b_hn))
            h = (1.0 - z) * n + z * h
            h_all[l] = h
            x = h
        outs.append(x)
        if head_params is not None:
            w1t, b1, w2_row, b2 = head_params
            hm = jnp.dot(x, w1t, precision=P) + b1
            preds.append(jnp.sum(hm * w2_row, axis=-1, keepdims=True) + b2)
    out = jnp.stack(outs, 0)
    hfin = jnp.stack(h_all, 0)
    if head_params is not None:
        return out, hfin, jnp.stack(preds, 0)
    return out, hfin


# -----------------------------------------------------------------------------
# GraphRNN forward (faithful to the reference control flow)
# -----------------------------------------------------------------------------
def graph_rnn_forward(node_params, edge_params, reg_params, inp, target,
                      hidden=None, *, hidden_size, num_layers_node):
    if hidden is None:
        hidden = jnp.zeros((num_layers_node, inp.shape[1], hidden_size), inp.dtype)

    # TODO(synk): torch.empty_like(target) returns uninitialized memory; we return a
    # deterministic zero buffer instead (no element is ever written in the reference
    # forward either -- the edge loop below is dead).
    prediction = jnp.zeros_like(target)

    edge_output = inp
    current_lowest_node = 0
    node_i = 1
    while True:
        node_output, node_hidden = gru_sequence(node_params, edge_output, hidden)
        edge_hidden = node_output
        for node_j in range(current_lowest_node, node_i - 1):
            # TODO(synk): dead branch in the reference module (node_i / i never advance);
            # its torch.bernoulli sampling and .item()-driven control flow have no clean
            # Pallas equivalent.  The fused edge-GRU + edge-regression kernel it would
            # call is exercised in __main__.
            pass
        if current_lowest_node >= node_i - 1:
            break
    del node_hidden, edge_hidden  # unused, mirroring the reference
    return prediction


# -----------------------------------------------------------------------------
# Deterministic parameter construction (PyTorch-style uniform init, merged layout)
# -----------------------------------------------------------------------------
def make_gru_params(key, num_layers, input_size, hidden_size, dtype=jnp.float32):
    params = []
    H = hidden_size
    bound = 1.0 / (hidden_size ** 0.5)
    for layer in range(num_layers):
        in_f = input_size if layer == 0 else hidden_size
        key, k1, k2, k3, k4 = jax.random.split(key, 5)
        wih_t = jax.random.uniform(k1, (in_f, 3 * H), dtype, -bound, bound)   # cols r|z|n
        whh_t = jax.random.uniform(k2, (H, 3 * H), dtype, -bound, bound)
        bih = jax.random.uniform(k3, (1, 3 * H), dtype, -bound, bound)
        bhh = jax.random.uniform(k4, (1, 3 * H), dtype, -bound, bound)
        b_rz = bih[:, :2 * H] + bhh[:, :2 * H]     # pre-summed r/z biases
        b_in = bih[:, 2 * H:]                      # n-gate input bias
        b_hn = bhh[:, 2 * H:]                      # n-gate hidden bias (inside r * (...))
        params.append((wih_t, whh_t, b_rz, b_in, b_hn))
    return params, key


def make_regression_params(key, input_size, dtype=jnp.float32):
    mid = input_size // 2
    b1s = 1.0 / (input_size ** 0.5)
    b2s = 1.0 / (mid ** 0.5)
    key, k1, k2, k3, k4 = jax.random.split(key, 5)
    w1t = jax.random.uniform(k1, (input_size, mid), dtype, -b1s, b1s)
    b1 = jax.random.uniform(k2, (1, mid), dtype, -b1s, b1s)
    w2_row = jax.random.uniform(k3, (1, mid), dtype, -b2s, b2s)   # row vector (lane reduce)
    b2 = jax.random.uniform(k4, (1, 1), dtype, -b2s, b2s)
    return (w1t, b1, w2_row, b2), key


# -----------------------------------------------------------------------------
if __name__ == "__main__":
    input_size = 16
    hidden_size = 32
    num_layers_node = 2
    num_layers_edge = 2
    batch = 2          # N
    seq_len = 1        # L of the SOS token (module spec)
    target_len = 8     # L_S

    key = jax.random.PRNGKey(0)
    node_params, key = make_gru_params(key, num_layers_node, input_size, hidden_size)
    edge_params, key = make_gru_params(key, num_layers_edge, hidden_size, input_size)
    reg_params, key = make_regression_params(key, input_size)

    key, kx, kt, kl = jax.random.split(key, 4)
    sos = jax.random.normal(kx, (seq_len, batch, input_size), jnp.float32)
    target = (jax.random.uniform(kt, (target_len,)) > 0.5).astype(jnp.float32)

    # Full GraphRNN forward (node-level GRU runs once on the fused Pallas hot path).
    prediction = graph_rnn_forward(
        node_params, edge_params, reg_params, sos, target,
        hidden=None, hidden_size=hidden_size, num_layers_node=num_layers_node)
    prediction = jax.block_until_ready(prediction)
    assert prediction.shape == target.shape

    # Exercise the fused sequence kernel over a longer recurrence (L=8): one launch,
    # weights resident, hidden carried in registers, outputs written once per step into
    # the resident (L,N,H) slab.  Check against pure-JAX ref (f32 -> tight tolerance).
    L = 8
    x_long = jax.random.normal(kl, (L, batch, input_size), jnp.float32)
    h0 = jnp.zeros((num_layers_node, batch, hidden_size), jnp.float32)
    node_out, node_hid = gru_sequence(node_params, x_long, h0)
    node_out = jax.block_until_ready(node_out)
    ref_out, ref_hid = gru_sequence_ref(node_params, x_long, h0)
    assert node_out.shape == (L, batch, hidden_size)
    assert node_hid.shape == (num_layers_node, batch, hidden_size)
    assert bool(jnp.allclose(node_out, ref_out, atol=1e-4, rtol=1e-4))
    assert bool(jnp.allclose(node_hid, ref_hid, atol=1e-4, rtol=1e-4))

    # Edge-level GRU with the fused (hoisted) edge-regression head (dead path in the
    # reference forward; exercised here for completeness).
    edge_h0 = jnp.zeros((num_layers_edge, batch, input_size), jnp.float32)
    edge_out, edge_hid, edge_pred = gru_sequence(
        edge_params, node_out, edge_h0, head_params=reg_params)
    edge_pred = jax.block_until_ready(edge_pred)
    r_out, r_hid, r_pred = gru_sequence_ref(
        edge_params, node_out, edge_h0, head_params=reg_params)
    assert edge_out.shape == (L, batch, input_size)
    assert edge_pred.shape == (L, batch, 1)
    assert bool(jnp.allclose(edge_out, r_out, atol=1e-4, rtol=1e-4))
    assert bool(jnp.allclose(edge_hid, r_hid, atol=1e-4, rtol=1e-4))
    assert bool(jnp.allclose(edge_pred, r_pred, atol=1e-4, rtol=1e-4))
    assert bool(jnp.all(jnp.isfinite(node_out))) and bool(jnp.all(jnp.isfinite(edge_pred)))

    print("KERNEL_OK")
</pallas_src>

<mosaic_0001>
module attributes {stable_mosaic.version = 11 : i64} {
  func.func @kernel(%arg0: memref<1x2x16xf32, #tpu.memory_space<vmem>>, %arg1: memref<2x2x32xf32, #tpu.memory_space<vmem>>, %arg2: memref<16x96xf32, #tpu.memory_space<vmem>>, %arg3: memref<32x96xf32, #tpu.memory_space<vmem>>, %arg4: memref<1x64xf32, #tpu.memory_space<vmem>>, %arg5: memref<1x32xf32, #tpu.memory_space<vmem>>, %arg6: memref<1x32xf32, #tpu.memory_space<vmem>>, %arg7: memref<32x96xf32, #tpu.memory_space<vmem>>, %arg8: memref<32x96xf32, #tpu.memory_space<vmem>>, %arg9: memref<1x64xf32, #tpu.memory_space<vmem>>, %arg10: memref<1x32xf32, #tpu.memory_space<vmem>>, %arg11: memref<1x32xf32, #tpu.memory_space<vmem>>, %arg12: memref<1x2x32xf32, #tpu.memory_space<vmem>>, %arg13: memref<2x2x32xf32, #tpu.memory_space<vmem>>) attributes {dimension_semantics = [], scalar_prefetch = 0 : i64, scratch_operands = 0 : i64, tpu.core_type = #tpu.core_type<tc>} {
    %c0 = arith.constant 0 : index
    %c0_0 = arith.constant 0 : index
    %0 = vector.load %arg2[%c0, %c0_0] : memref<16x96xf32, #tpu.memory_space<vmem>>, vector<16x96xf32>
    %c0_1 = arith.constant 0 : index
    %c0_2 = arith.constant 0 : index
    %1 = vector.load %arg3[%c0_1, %c0_2] : memref<32x96xf32, #tpu.memory_space<vmem>>, vector<32x96xf32>
    %c0_3 = arith.constant 0 : index
    %c0_4 = arith.constant 0 : index
    %2 = vector.load %arg4[%c0_3, %c0_4] : memref<1x64xf32, #tpu.memory_space<vmem>>, vector<1x64xf32>
    %c0_5 = arith.constant 0 : index
    %c0_6 = arith.constant 0 : index
    %3 = vector.load %arg5[%c0_5, %c0_6] : memref<1x32xf32, #tpu.memory_space<vmem>>, vector<1x32xf32>
    %c0_7 = arith.constant 0 : index
    %c0_8 = arith.constant 0 : index
    %4 = vector.load %arg6[%c0_7, %c0_8] : memref<1x32xf32, #tpu.memory_space<vmem>>, vector<1x32xf32>
    %c0_9 = arith.constant 0 : index
    %c0_10 = arith.constant 0 : index
    %5 = vector.load %arg7[%c0_9, %c0_10] : memref<32x96xf32, #tpu.memory_space<vmem>>, vector<32x96xf32>
    %c0_11 = arith.constant 0 : index
    %c0_12 = arith.constant 0 : index
    %6 = vector.load %arg8[%c0_11, %c0_12] : memref<32x96xf32, #tpu.memory_space<vmem>>, vector<32x96xf32>
    %c0_13 = arith.constant 0 : index
    %c0_14 = arith.constant 0 : index
    %7 = vector.load %arg9[%c0_13, %c0_14] : memref<1x64xf32, #tpu.memory_space<vmem>>, vector<1x64xf32>
    %c0_15 = arith.constant 0 : index
    %c0_16 = arith.constant 0 : index
    %8 = vector.load %arg10[%c0_15, %c0_16] : memref<1x32xf32, #tpu.memory_space<vmem>>, vector<1x32xf32>
    %c0_17 = arith.constant 0 : index
    %c0_18 = arith.constant 0 : index
    %9 = vector.load %arg11[%c0_17, %c0_18] : memref<1x32xf32, #tpu.memory_space<vmem>>, vector<1x32xf32>
    %c0_19 = arith.constant 0 : index
    %c0_20 = arith.constant 0 : index
    %c0_21 = arith.constant 0 : index
    %10 = vector.load %arg1[%c0_19, %c0_20, %c0_21] : memref<2x2x32xf32, #tpu.memory_space<vmem>>, vector<1x2x32xf32>
    %11 = vector.shape_cast %10 : vector<1x2x32xf32> to vector<2x32xf32>
    %c1 = arith.constant 1 : index
    %c0_22 = arith.constant 0 : index
    %c0_23 = arith.constant 0 : index
    %12 = vector.load %arg1[%c1, %c0_22, %c0_23] : memref<2x2x32xf32, #tpu.memory_space<vmem>>, vector<1x2x32xf32>
    %13 = vector.shape_cast %12 : vector<1x2x32xf32> to vector<2x32xf32>
    %c0_i32 = arith.constant 0 : i32
    %14 = arith.index_cast %c0_i32 : i32 to index
    %c0_24 = arith.constant 0 : index
    %c0_25 = arith.constant 0 : index
    %15 = vector.load %arg0[%14, %c0_24, %c0_25] : memref<1x2x16xf32, #tpu.memory_space<vmem>>, vector<1x2x16xf32>
    %16 = vector.shape_cast %15 : vector<1x2x16xf32> to vector<2x16xf32>
    %cst = arith.constant dense<0.000000e+00> : vector<2x96xf32>
    %17 = tpu.matmul %16, %0, %cst {dimension_numbers = #tpu.dot_dimension_numbers<[1], [0], [0], [1], [0, 0, 1, 1], [], []>} : vector<2x16xf32>, vector<16x96xf32>, vector<2x96xf32> -> vector<2x96xf32>
    %cst_26 = arith.constant dense<0.000000e+00> : vector<2x96xf32>
    %18 = tpu.matmul %11, %1, %cst_26 {dimension_numbers = #tpu.dot_dimension_numbers<[1], [0], [0], [1], [0, 0, 1, 1], [], []>} : vector<2x32xf32>, vector<32x96xf32>, vector<2x96xf32> -> vector<2x96xf32>
    %19 = vector.extract_strided_slice %17 {offsets = [0, 0], sizes = [2, 64], strides = [1, 1]} : vector<2x96xf32> to vector<2x64xf32>
    %20 = vector.extract_strided_slice %18 {offsets = [0, 0], sizes = [2, 64], strides = [1, 1]} : vector<2x96xf32> to vector<2x64xf32>
    %21 = arith.addf %19, %20 : vector<2x64xf32>
    %22 = vector.broadcast %2 : vector<1x64xf32> to vector<2x64xf32>
    %23 = arith.addf %21, %22 : vector<2x64xf32>
    %24 = arith.negf %23 : vector<2x64xf32>
    %25 = math.exp %24 : vector<2x64xf32>
    %cst_27 = arith.constant 1.000000e+00 : f32
    %26 = vector.broadcast %cst_27 : f32 to vector<2x64xf32>
    %27 = arith.addf %26, %25 : vector<2x64xf32>
    %28 = arith.divf %26, %27 : vector<2x64xf32>
    %29 = vector.extract_strided_slice %28 {offsets = [0, 0], sizes = [2, 32], strides = [1, 1]} : vector<2x64xf32> to vector<2x32xf32>
    %30 = vector.extract_strided_slice %28 {offsets = [0, 32], sizes = [2, 32], strides = [1, 1]} : vector<2x64xf32> to vector<2x32xf32>
    %31 = vector.extract_strided_slice %17 {offsets = [0, 64], sizes = [2, 32], strides = [1, 1]} : vector<2x96xf32> to vector<2x32xf32>
    %32 = vector.broadcast %3 : vector<1x32xf32> to vector<2x32xf32>
    %33 = arith.addf %31, %32 : vector<2x32xf32>
    %34 = vector.extract_strided_slice %18 {offsets = [0, 64], sizes = [2, 32], strides = [1, 1]} : vector<2x96xf32> to vector<2x32xf32>
    %35 = vector.broadcast %4 : vector<1x32xf32> to vector<2x32xf32>
    %36 = arith.addf %34, %35 : vector<2x32xf32>
    %37 = arith.mulf %29, %36 : vector<2x32xf32>
    %38 = arith.addf %33, %37 : vector<2x32xf32>
    %39 = math.tanh %38 : vector<2x32xf32>
    %cst_28 = arith.constant 1.000000e+00 : f32
    %40 = vector.broadcast %cst_28 : f32 to vector<2x32xf32>
    %41 = arith.subf %40, %30 : vector<2x32xf32>
    %42 = arith.mulf %41, %39 : vector<2x32xf32>
    %43 = arith.mulf %30, %11 : vector<2x32xf32>
    %44 = arith.addf %42, %43 : vector<2x32xf32>
    %cst_29 = arith.constant dense<0.000000e+00> : vector<2x96xf32>
    %45 = tpu.matmul %44, %5, %cst_29 {dimension_numbers = #tpu.dot_dimension_numbers<[1], [0], [0], [1], [0, 0, 1, 1], [], []>} : vector<2x32xf32>, vector<32x96xf32>, vector<2x96xf32> -> vector<2x96xf32>
    %cst_30 = arith.constant dense<0.000000e+00> : vector<2x96xf32>
    %46 = tpu.matmul %13, %6, %cst_30 {dimension_numbers = #tpu.dot_dimension_numbers<[1], [0], [0], [1], [0, 0, 1, 1], [], []>} : vector<2x32xf32>, vector<32x96xf32>, vector<2x96xf32> -> vector<2x96xf32>
    %47 = vector.extract_strided_slice %45 {offsets = [0, 0], sizes = [2, 64], strides = [1, 1]} : vector<2x96xf32> to vector<2x64xf32>
    %48 = vector.extract_strided_slice %46 {offsets = [0, 0], sizes = [2, 64], strides = [1, 1]} : vector<2x96xf32> to vector<2x64xf32>
    %49 = arith.addf %47, %48 : vector<2x64xf32>
    %50 = vector.broadcast %7 : vector<1x64xf32> to vector<2x64xf32>
    %51 = arith.addf %49, %50 : vector<2x64xf32>
    %52 = arith.negf %51 : vector<2x64xf32>
    %53 = math.exp %52 : vector<2x64xf32>
    %cst_31 = arith.constant 1.000000e+00 : f32
    %54 = vector.broadcast %cst_31 : f32 to vector<2x64xf32>
    %55 = arith.addf %54, %53 : vector<2x64xf32>
    %56 = arith.divf %54, %55 : vector<2x64xf32>
    %57 = vector.extract_strided_slice %56 {offsets = [0, 0], sizes = [2, 32], strides = [1, 1]} : vector<2x64xf32> to vector<2x32xf32>
    %58 = vector.extract_strided_slice %56 {offsets = [0, 32], sizes = [2, 32], strides = [1, 1]} : vector<2x64xf32> to vector<2x32xf32>
    %59 = vector.extract_strided_slice %45 {offsets = [0, 64], sizes = [2, 32], strides = [1, 1]} : vector<2x96xf32> to vector<2x32xf32>
    %60 = vector.broadcast %8 : vector<1x32xf32> to vector<2x32xf32>
    %61 = arith.addf %59, %60 : vector<2x32xf32>
    %62 = vector.extract_strided_slice %46 {offsets = [0, 64], sizes = [2, 32], strides = [1, 1]} : vector<2x96xf32> to vector<2x32xf32>
    %63 = vector.broadcast %9 : vector<1x32xf32> to vector<2x32xf32>
    %64 = arith.addf %62, %63 : vector<2x32xf32>
    %65 = arith.mulf %57, %64 : vector<2x32xf32>
    %66 = arith.addf %61, %65 : vector<2x32xf32>
    %67 = math.tanh %66 : vector<2x32xf32>
    %cst_32 = arith.constant 1.000000e+00 : f32
    %68 = vector.broadcast %cst_32 : f32 to vector<2x32xf32>
    %69 = arith.subf %68, %58 : vector<2x32xf32>
    %70 = arith.mulf %69, %67 : vector<2x32xf32>
    %71 = arith.mulf %58, %13 : vector<2x32xf32>
    %72 = arith.addf %70, %71 : vector<2x32xf32>
    %73 = arith.index_cast %c0_i32 : i32 to index
    %c0_33 = arith.constant 0 : index
    %c0_34 = arith.constant 0 : index
    %74 = vector.load %arg12[%73, %c0_33, %c0_34] : memref<1x2x32xf32, #tpu.memory_space<vmem>>, vector<1x2x32xf32>
    %75 = vector.shape_cast %74 : vector<1x2x32xf32> to vector<2x32xf32>
    %76 = vector.shape_cast %72 : vector<2x32xf32> to vector<1x2x32xf32>
    tpu.vector_store %arg12[%73, %c0_33, %c0_34], %76 {strides = array<i32>} : memref<1x2x32xf32, #tpu.memory_space<vmem>>, vector<1x2x32xf32>,
    %c1_i32 = arith.constant 1 : i32
    %c0_35 = arith.constant 0 : index
    %c0_36 = arith.constant 0 : index
    %c0_37 = arith.constant 0 : index
    %77 = vector.load %arg13[%c0_35, %c0_36, %c0_37] : memref<2x2x32xf32, #tpu.memory_space<vmem>>, vector<1x2x32xf32>
    %78 = vector.shape_cast %77 : vector<1x2x32xf32> to vector<2x32xf32>
    %79 = vector.shape_cast %44 : vector<2x32xf32> to vector<1x2x32xf32>
    tpu.vector_store %arg13[%c0_35, %c0_36, %c0_37], %79 {strides = array<i32>} : memref<2x2x32xf32, #tpu.memory_space<vmem>>, vector<1x2x32xf32>,
    %c1_38 = arith.constant 1 : index
    %c0_39 = arith.constant 0 : index
    %c0_40 = arith.constant 0 : index
    %80 = vector.load %arg13[%c1_38, %c0_39, %c0_40] : memref<2x2x32xf32, #tpu.memory_space<vmem>>, vector<1x2x32xf32>
    %81 = vector.shape_cast %80 : vector<1x2x32xf32> to vector<2x32xf32>
    %82 = vector.shape_cast %72 : vector<2x32xf32> to vector<1x2x32xf32>
    tpu.vector_store %arg13[%c1_38, %c0_39, %c0_40], %82 {strides = array<i32>} : memref<2x2x32xf32, #tpu.memory_space<vmem>>, vector<1x2x32xf32>,
    return
  }
}

</mosaic_0001>

<llo_original>
// kernel: tpu_custom_call.1
$region0: #{tpu_custom_call.1}
  #allocation0 [shape = 'u32[]', space=smem, size = 0x4, offset = 0x4, fixed_abs, tag = 'smem constant byte address 0x4 - core index']
  #allocation1 [shape = 'u32[72,128]{1,0:T(1,128)}', space=vmem, size = 0x9000, scoped, tag = 'internal scratch']
  %s0 = inlined_call_operand.hbm [shape: f32[1,2,16], index: 0, kind: input, shape index: {}]
  %s1 = inlined_call_operand.hbm [shape: f32[2,2,32], index: 1, kind: input, shape index: {}]
  %s2 = inlined_call_operand.hbm [shape: f32[16,96], index: 2, kind: input, shape index: {}]
  %s3 = inlined_call_operand.hbm [shape: f32[32,96], index: 3, kind: input, shape index: {}]
  %s4 = inlined_call_operand.vmem [shape: f32[1,64], index: 4, kind: input, shape index: {}]
  %s5 = inlined_call_operand.vmem [shape: f32[1,32], index: 5, kind: input, shape index: {}]
  %s6 = inlined_call_operand.vmem [shape: f32[1,32], index: 6, kind: input, shape index: {}]
  %s7 = inlined_call_operand.hbm [shape: f32[32,96], index: 7, kind: input, shape index: {}]
  %s8 = inlined_call_operand.hbm [shape: f32[32,96], index: 8, kind: input, shape index: {}]
  %s9 = inlined_call_operand.vmem [shape: f32[1,64], index: 9, kind: input, shape index: {}]
  %s10 = inlined_call_operand.vmem [shape: f32[1,32], index: 10, kind: input, shape index: {}]
  %s11 = inlined_call_operand.vmem [shape: f32[1,32], index: 11, kind: input, shape index: {}]
  %s12 = inlined_call_operand.hbm [shape: f32[1,2,32], index: 12, kind: output, shape index: {0}]
  %s13 = inlined_call_operand.hbm [shape: f32[2,2,32], index: 13, kind: output, shape index: {1}]
  %14 = xla_tuple %s12, %s13
  %s15 = sld [smem:[#allocation0]]
  $region90: #{tpu_custom_call.1} parent=0
    _
  %s17 = ssub.s32 1, %s15
  %s18 = scalar_select 0, %s17, %s15
  $region1: #{tpu_custom_call.1} parent=0
    #allocation2 [shape = 'u8[1024]{0}', space=vmem, size = 0x400, scoped, tag = 'input window, operand 0, single buffered']
    #allocation3 [shape = 's32[1]{0}', space=sflag, size = 0x4, scoped, tag = 'scoped memory for tpu_custom_call.1']
    #allocation4 [shape = 's32[1]{0}', space=sflag, size = 0x4, scoped, tag = 'scoped memory for tpu_custom_call.1']
    #allocation5 [shape = 'u8[2048]{0}', space=vmem, size = 0x800, scoped, tag = 'input window, operand 1, single buffered']
    #allocation6 [shape = 's32[1]{0}', space=sflag, size = 0x4, scoped, tag = 'scoped memory for tpu_custom_call.1']
    #allocation7 [shape = 'u8[8192]{0}', space=vmem, size = 0x2000, scoped, tag = 'input window, operand 2, single buffered']
    #allocation8 [shape = 'u8[16384]{0}', space=vmem, size = 0x4000, scoped, tag = 'input window, operand 3, single buffered']
    #allocation9 [shape = 's32[1]{0}', space=sflag, size = 0x4, scoped, tag = 'scoped memory for tpu_custom_call.1']
    #allocation10 [shape = 'u8[16384]{0}', space=vmem, size = 0x4000, scoped, tag = 'input window, operand 7, single buffered']
    #allocation11 [shape = 'u8[16384]{0}', space=vmem, size = 0x4000, scoped, tag = 'input window, operand 8, single buffered']
    #allocation12 [shape = 's32[1]{0}', space=sflag, size = 0x4, scoped, tag = 'scoped memory for tpu_custom_call.1']
    #allocation13 [shape = 'u8[1024]{0}', space=vmem, size = 0x400, scoped, tag = 'output window, operand 0, single buffered']
    #allocation14 [shape = 'u8[2048]{0}', space=vmem, size = 0x800, scoped, tag = 'output window, operand 1, single buffered']
    #allocation15 [shape = 's32[1]{0}', space=sflag, size = 0x4, scoped, tag = 'scoped memory for tpu_custom_call.1']
    %19 = vsyncpa [#allocation3], 0
    %20 = vsyncpa [#allocation6], 0
    %21 = vsyncpa [#allocation9], 0
    %22 = vsyncpa [#allocation12], 0
    %23 = vsyncpa [#allocation4], 0
    %24 = vsyncpa [#allocation15], 0
    // Predicated region
    $region2: #{tpu_custom_call.1} parent=1 // pred_check
      _
    $region3: #{tpu_custom_call.1} parent=1 // pred_check_branch
      %26 = sbr.rel (0) target = $region5
    $region4: #{tpu_custom_call.1} parent=1 // pred_region
      %28 = vsyncadd [#allocation3], 0
      %s30 = sshll.u32 %s0, 4
      %s31 = int_to_ptr.hbm [resolvable:$true] %s30
      %s32 = sshll.u32 [#allocation2], 4
      %s33 = int_to_ptr.vmem [resolvable:$true] %s32
      %35 = dma.hbm_to_vmem [thread:$0]  %s31, 32, %s33, [#allocation3]
    $region5: #{tpu_custom_call.1} parent=1 // pred_fallthru
      _
    // Predicated region
    $region6: #{tpu_custom_call.1} parent=1 // pred_check
      _
    $region7: #{tpu_custom_call.1} parent=1 // pred_check_branch
      %37 = sbr.rel (0) target = $region9
    $region8: #{tpu_custom_call.1} parent=1 // pred_region
      %39 = vsyncadd [#allocation6], 0
      %s40 = sshll.u32 %s1, 4
      %s41 = int_to_ptr.hbm [resolvable:$true] %s40
      %s42 = sshll.u32 [#allocation5], 4
      %s43 = int_to_ptr.vmem [resolvable:$true] %s42
      %48 = dma.hbm_to_vmem [thread:$0]  %s41, 64, %s43, [#allocation6], 32, 32, 2
    $region9: #{tpu_custom_call.1} parent=1 // pred_fallthru
      _
    // Predicated region
    $region10: #{tpu_custom_call.1} parent=1 // pred_check
      _
    $region11: #{tpu_custom_call.1} parent=1 // pred_check_branch
      %50 = sbr.rel (0) target = $region13
    $region12: #{tpu_custom_call.1} parent=1 // pred_region
      %52 = vsyncadd [#allocation6], 0
      %s53 = sshll.u32 %s2, 4
      %s54 = int_to_ptr.hbm [resolvable:$true] %s53
      %s55 = sshll.u32 [#allocation7], 4
      %s56 = int_to_ptr.vmem [resolvable:$true] %s55
      %61 = dma.hbm_to_vmem [thread:$0]  %s54, 256, %s56, [#allocation6], 128, 128, 8
    $region13: #{tpu_custom_call.1} parent=1 // pred_fallthru
      _
    // Predicated region
    $region14: #{tpu_custom_call.1} parent=1 // pred_check
      _
    $region15: #{tpu_custom_call.1} parent=1 // pred_check_branch
      %63 = sbr.rel (0) target = $region17
    $region16: #{tpu_custom_call.1} parent=1 // pred_region
      %65 = vsyncadd [#allocation9], 0
      %s66 = sshll.u32 %s3, 4
      %s67 = int_to_ptr.hbm [resolvable:$true] %s66
      %s68 = sshll.u32 [#allocation8], 4
      %s69 = int_to_ptr.vmem [resolvable:$true] %s68
      %74 = dma.hbm_to_vmem [thread:$0]  %s67, 512, %s69, [#allocation9], 128, 128, 8
    $region17: #{tpu_custom_call.1} parent=1 // pred_fallthru
      _
    // Predicated region
    $region18: #{tpu_custom_call.1} parent=1 // pred_check
      _
    $region19: #{tpu_custom_call.1} parent=1 // pred_check_branch
      %76 = sbr.rel (0) target = $region21
    $region20: #{tpu_custom_call.1} parent=1 // pred_region
      _
    $region21: #{tpu_custom_call.1} parent=1 // pred_fallthru
      _
    // Predicated region
    $region22: #{tpu_custom_call.1} parent=1 // pred_check
      _
    $region23: #{tpu_custom_call.1} parent=1 // pred_check_branch
      %78 = sbr.rel (0) target = $region25
    $region24: #{tpu_custom_call.1} parent=1 // pred_region
      _
    $region25: #{tpu_custom_call.1} parent=1 // pred_fallthru
      _
    // Predicated region
    $region26: #{tpu_custom_call.1} parent=1 // pred_check
      _
    $region27: #{tpu_custom_call.1} parent=1 // pred_check_branch
      %80 = sbr.rel (0) target = $region29
    $region28: #{tpu_custom_call.1} parent=1 // pred_region
      _
    $region29: #{tpu_custom_call.1} parent=1 // pred_fallthru
      _
    // Predicated region
    $region30: #{tpu_custom_call.1} parent=1 // pred_check
      _
    $region31: #{tpu_custom_call.1} parent=1 // pred_check_branch
      %82 = sbr.rel (0) target = $region33
    $region32: #{tpu_custom_call.1} parent=1 // pred_region
      %84 = vsyncadd [#allocation9], 0
      %s85 = sshll.u32 %s7, 4
      %s86 = int_to_ptr.hbm [resolvable:$true] %s85
      %s87 = sshll.u32 [#allocation10], 4
      %s88 = int_to_ptr.vmem [resolvable:$true] %s87
      %93 = dma.hbm_to_vmem [thread:$0]  %s86, 512, %s88, [#allocation9], 128, 128, 8
    $region33: #{tpu_custom_call.1} parent=1 // pred_fallthru
      _
    // Predicated region
    $region34: #{tpu_custom_call.1} parent=1 // pred_check
      _
    $region35: #{tpu_custom_call.1} parent=1 // pred_check_branch
      %95 = sbr.rel (0) target = $region37
    $region36: #{tpu_custom_call.1} parent=1 // pred_region
      %97 = vsyncadd [#allocation12], 0
      %s98 = sshll.u32 %s8, 4
      %s99 = int_to_ptr.hbm [resolvable:$true] %s98
      %s100 = sshll.u32 [#allocation11], 4
      %s101 = int_to_ptr.vmem [resolvable:$true] %s100
      %106 = dma.hbm_to_vmem [thread:$0]  %s99, 512, %s101, [#allocation12], 128, 128, 8
    $region37: #{tpu_custom_call.1} parent=1 // pred_fallthru
      _
    // Predicated region
    $region38: #{tpu_custom_call.1} parent=1 // pred_check
      _
    $region39: #{tpu_custom_call.1} parent=1 // pred_check_branch
      %108 = sbr.rel (0) target = $region41
    $region40: #{tpu_custom_call.1} parent=1 // pred_region
      _
    $region41: #{tpu_custom_call.1} parent=1 // pred_fallthru
      _
    // Predicated region
    $region42: #{tpu_custom_call.1} parent=1 // pred_check
      _
    $region43: #{tpu_custom_call.1} parent=1 // pred_check_branch
      %110 = sbr.rel (0) target = $region45
    $region44: #{tpu_custom_call.1} parent=1 // pred_region
      _
    $region45: #{tpu_custom_call.1} parent=1 // pred_fallthru
      _
    // Predicated region
    $region46: #{tpu_custom_call.1} parent=1 // pred_check
      _
    $region47: #{tpu_custom_call.1} parent=1 // pred_check_branch
      %112 = sbr.rel (0) target = $region49
    $region48: #{tpu_custom_call.1} parent=1 // pred_region
      _
    $region49: #{tpu_custom_call.1} parent=1 // pred_fallthru
      _
    // Predicated region
    $region50: #{tpu_custom_call.1} parent=1 // pred_check
      _
    $region51: #{tpu_custom_call.1} parent=1 // pred_check_branch
      %114 = sbr.rel (0) target = $region53
    $region52: #{tpu_custom_call.1} parent=1 // pred_region
      %116 = dma.done [#allocation3], 32
    $region53: #{tpu_custom_call.1} parent=1 // pred_fallthru
      _
    // Predicated region
    $region54: #{tpu_custom_call.1} parent=1 // pred_check
      _
    $region55: #{tpu_custom_call.1} parent=1 // pred_check_branch
      %118 = sbr.rel (0) target = $region57
    $region56: #{tpu_custom_call.1} parent=1 // pred_region
      %120 = dma.done [#allocation6], 64
    $region57: #{tpu_custom_call.1} parent=1 // pred_fallthru
      _
    // Predicated region
    $region58: #{tpu_custom_call.1} parent=1 // pred_check
      _
    $region59: #{tpu_custom_call.1} parent=1 // pred_check_branch
      %122 = sbr.rel (0) target = $region61
    $region60: #{tpu_custom_call.1} parent=1 // pred_region
      %124 = dma.done [#allocation6], 256
    $region61: #{tpu_custom_call.1} parent=1 // pred_fallthru
      _
    // Predicated region
    $region62: #{tpu_custom_call.1} parent=1 // pred_check
      _
    $region63: #{tpu_custom_call.1} parent=1 // pred_check_branch
      %126 = sbr.rel (0) target = $region65
    $region64: #{tpu_custom_call.1} parent=1 // pred_region
      %128 = dma.done [#allocation9], 512
    $region65: #{tpu_custom_call.1} parent=1 // pred_fallthru
      _
    // Predicated region
    $region66: #{tpu_custom_call.1} parent=1 // pred_check
      _
    $region67: #{tpu_custom_call.1} parent=1 // pred_check_branch
      %130 = sbr.rel (0) target = $region69
    $region68: #{tpu_custom_call.1} parent=1 // pred_region
      %132 = dma.done [#allocation9], 512
    $region69: #{tpu_custom_call.1} parent=1 // pred_fallthru
      _
    // Predicated region
    $region70: #{tpu_custom_call.1} parent=1 // pred_check
      _
    $region71: #{tpu_custom_call.1} parent=1 // pred_check_branch
      %134 = sbr.rel (0) target = $region73
    $region72: #{tpu_custom_call.1} parent=1 // pred_region
      %136 = dma.done [#allocation12], 512
    $region73: #{tpu_custom_call.1} parent=1 // pred_fallthru
      _
    %v137 = vld [vmem:[#allocation7] sm:$0xff]
    %v138 = vld [vmem:[#allocation7 + $0x8] sm:$0xff]
    %v139 = vld [vmem:[#allocation8] sm:$0xff]
    %v140 = vld [vmem:[#allocation8 + $0x8] sm:$0xff]
    %v141 = vld [vmem:[#allocation8 + $0x10] sm:$0xff]
    %v142 = vld [vmem:[#allocation8 + $0x18] sm:$0xff]
    %v143 = vld [vmem:[%s4] sm:$0x1]
    %v144 = vld [vmem:[%s5] sm:$0x1]
    %v145 = vld [vmem:[%s6] sm:$0x1]
    %v146 = vld [vmem:[#allocation10] sm:$0xff]
    %v147 = vld [vmem:[#allocation10 + $0x8] sm:$0xff]
    %v148 = vld [vmem:[#allocation10 + $0x10] sm:$0xff]
    %v149 = vld [vmem:[#allocation10 + $0x18] sm:$0xff]
    %v150 = vld [vmem:[#allocation11] sm:$0xff]
    %v151 = vld [vmem:[#allocation11 + $0x8] sm:$0xff]
    %v152 = vld [vmem:[#allocation11 + $0x10] sm:$0xff]
    %v153 = vld [vmem:[#allocation11 + $0x18] sm:$0xff]
    %v154 = vld [vmem:[%s9] sm:$0x1]
    %v155 = vld [vmem:[%s10] sm:$0x1]
    %v156 = vld [vmem:[%s11] sm:$0x1]
    %v157 = vld [vmem:[#allocation5] sm:$0x3]
    %s158 = scalar_lea.vmem [#allocation5], 2
    %v159 = vld [vmem:[%s158] sm:$0x3]
    %v160 = vld [vmem:[#allocation2] sm:$0x3]
    %vm161 = vcmask 130048
    %v163 = vsel %vm161, %v160, 0
    %165 = vmatpush.msra.mxu0 0.0
    %166 = vmatpush.msra.mxu0 0.0
    %167 = vmatpush.msra.mxu0 0.0
    %168 = vmatpush.msra.mxu0 0.0
    %169 = vmatpush.msra.mxu0 0.0
    %170 = vmatpush.msra.mxu0 0.0
    %171 = vmatpush.msra.mxu0 0.0
    %172 = vmatpush.msra.mxu0 0.0
    %173 = vmatpush.msra.mxu0 0.0
    %174 = vmatpush.msra.mxu0 0.0
    %175 = vmatpush.msra.mxu0 0.0
    %176 = vmatpush.msra.mxu0 0.0
    %177 = vmatpush.msra.mxu0 0.0
    %178 = vmatpush.msra.mxu0 0.0
    %179 = vmatpush.msra.mxu0 %v138
    %180 = vmatpush.msra.mxu0 %v137
    %181 = vmatmul.f32.gmra.mxu0 %v163
    %v182 = vpop.f32.mrf.mxu0
    %v183 = vadd.f32 0.0, %v182
    %184 = vdwg.mxu0
    %vm185 = vcmask 261120
    %v187 = vsel %vm185, %v157, 0
    %189 = vmatpush.msra.mxu0 0.0
    %190 = vmatpush.msra.mxu0 0.0
    %191 = vmatpush.msra.mxu0 0.0
    %192 = vmatpush.msra.mxu0 0.0
    %193 = vmatpush.msra.mxu0 0.0
    %194 = vmatpush.msra.mxu0 0.0
    %195 = vmatpush.msra.mxu0 0.0
    %196 = vmatpush.msra.mxu0 0.0
    %197 = vmatpush.msra.mxu0 0.0
    %198 = vmatpush.msra.mxu0 0.0
    %199 = vmatpush.msra.mxu0 0.0
    %200 = vmatpush.msra.mxu0 0.0
    %201 = vmatpush.msra.mxu0 %v142
    %202 = vmatpush.msra.mxu0 %v141
    %203 = vmatpush.msra.mxu0 %v140
    %204 = vmatpush.msra.mxu0 %v139
    %205 = vmatmul.f32.gmra.mxu0 %v187
    %v206 = vpop.f32.mrf.mxu0
    %v207 = vadd.f32 0.0, %v206
    %208 = vdwg.mxu0
    %v209 = vadd.f32 %v183, %v207
    %v211 = vperm.slane %v143, 0
    %v213 = vadd.f32 %v209, %v211
    %v214 = vxor.u32 %v213, 2147483648
    %v215 = vmul.f32 %v214, 1.442695
    %v216 = vpow.pop %v215
    %v217 = vadd.f32 %v216, 1.0
    %v218 = vrcp.pop %v217
    %v219 = vmul.f32 %v217, %v218
    %v220 = vsub.f32 1.0, %v219
    %v221 = vmul.f32 %v218, %v220
    %v222 = vadd.f32 %v218, %v221
    %vm223 = vweird.f32 %v217
    %vm224 = vweird.f32 %v218
    %vm225 = vmor %vm223, %vm224
    %v226 = vsel %vm225, %v218, %v222
    %v227 = vand.u32 2147483647, %v217
    %vm228 = vcmp.eq.f32.partialorder %v227, 8.507059e+37
    %v229 = vand.u32 %v217, 2147483648
    %v230 = vor.u32 1.1754944e-38, %v229
    %v231 = vsel %vm228, %v230, %v226
    %v232 = vmul.f32 1.0, %v231
    %v234 = vperm.slane %v144, 0
    %235 = vrot.lane.b32.xlu0 %v234, 64
    %v236 = vpop.permute.xlu0 %235
    %v238 = vadd.f32 %v183, %v236
    %v240 = vperm.slane %v145, 0
    %241 = vrot.lane.b32.xlu0 %v240, 64
    %v242 = vpop.permute.xlu0 %241
    %v244 = vadd.f32 %v207, %v242
    %246 = vrot.lane.b32.xlu0 %v244, 64
    %v247 = vpop.permute.xlu0 %246
    %v249 = vmul.f32 %v232, %v247
    %251 = vrot.lane.b32.xlu0 %v249, 64
    %v252 = vpop.permute.xlu0 %251
    %v254 = vadd.f32 %v238, %v252
    %v255 = vtanh.pop %v254
    %v256 = vsub.f32 1.0, %v232
    %258 = vrot.lane.b32.xlu0 %v255, 96
    %v259 = vpop.permute.xlu0 %258
    %v261 = vmul.f32 %v256, %v259
    %262 = vrot.lane.b32.xlu0 %v157, 32
    %v263 = vpop.permute.xlu0 %262
    %v265 = vmul.f32 %v232, %v263
    %v266 = vadd.f32 %v261, %v265
    %268 = vrot.lane.b32.xlu0 %v266, 96
    %v269 = vpop.permute.xlu0 %268
    %v270 = vsel %vm185, %v269, 0
    %272 = vmatpush.msra.mxu0 0.0
    %273 = vmatpush.msra.mxu0 0.0
    %274 = vmatpush.msra.mxu0 0.0
    %275 = vmatpush.msra.mxu0 0.0
    %276 = vmatpush.msra.mxu0 0.0
    %277 = vmatpush.msra.mxu0 0.0
    %278 = vmatpush.msra.mxu0 0.0
    %279 = vmatpush.msra.mxu0 0.0
    %280 = vmatpush.msra.mxu0 0.0
    %281 = vmatpush.msra.mxu0 0.0
    %282 = vmatpush.msra.mxu0 0.0
    %283 = vmatpush.msra.mxu0 0.0
    %284 = vmatpush.msra.mxu0 %v149
    %285 = vmatpush.msra.mxu0 %v148
    %286 = vmatpush.msra.mxu0 %v147
    %287 = vmatpush.msra.mxu0 %v146
    %288 = vmatmul.f32.gmra.mxu0 %v270
    %v289 = vpop.f32.mrf.mxu0
    %v290 = vadd.f32 0.0, %v289
    %291 = vdwg.mxu0
    %v293 = vsel %vm185, %v159, 0
    %295 = vmatpush.msra.mxu0 0.0
    %296 = vmatpush.msra.mxu0 0.0
    %297 = vmatpush.msra.mxu0 0.0
    %298 = vmatpush.msra.mxu0 0.0
    %299 = vmatpush.msra.mxu0 0.0
    %300 = vmatpush.msra.mxu0 0.0
    %301 = vmatpush.msra.mxu0 0.0
    %302 = vmatpush.msra.mxu0 0.0
    %303 = vmatpush.msra.mxu0 0.0
    %304 = vmatpush.msra.mxu0 0.0
    %305 = vmatpush.msra.mxu0 0.0
    %306 = vmatpush.msra.mxu0 0.0
    %307 = vmatpush.msra.mxu0 %v153
    %308 = vmatpush.msra.mxu0 %v152
    %309 = vmatpush.msra.mxu0 %v151
    %310 = vmatpush.msra.mxu0 %v150
    %311 = vmatmul.f32.gmra.mxu0 %v293
    %v312 = vpop.f32.mrf.mxu0
    %v313 = vadd.f32 0.0, %v312
    %314 = vdwg.mxu0
    %v315 = vadd.f32 %v290, %v313
    %v317 = vperm.slane %v154, 0
    %v319 = vadd.f32 %v315, %v317
    %v320 = vxor.u32 %v319, 2147483648
    %v321 = vmul.f32 %v320, 1.442695
    %v322 = vpow.pop %v321
    %v323 = vadd.f32 %v322, 1.0
    %v324 = vrcp.pop %v323
    %v325 = vmul.f32 %v323, %v324
    %v326 = vsub.f32 1.0, %v325
    %v327 = vmul.f32 %v324, %v326
    %v328 = vadd.f32 %v324, %v327
    %vm329 = vweird.f32 %v323
    %vm330 = vweird.f32 %v324
    %vm331 = vmor %vm329, %vm330
    %v332 = vsel %vm331, %v324, %v328
    %v333 = vand.u32 2147483647, %v323
    %vm334 = vcmp.eq.f32.partialorder %v333, 8.507059e+37
    %v335 = vand.u32 %v323, 2147483648
    %v336 = vor.u32 1.1754944e-38, %v335
    %v337 = vsel %vm334, %v336, %v332
    %v338 = vmul.f32 1.0, %v337
    %v340 = vperm.slane %v155, 0
    %341 = vrot.lane.b32.xlu0 %v340, 64
    %v342 = vpop.permute.xlu0 %341
    %v344 = vadd.f32 %v290, %v342
    %v346 = vperm.slane %v156, 0
    %347 = vrot.lane.b32.xlu0 %v346, 64
    %v348 = vpop.permute.xlu0 %347
    %v350 = vadd.f32 %v313, %v348
    %352 = vrot.lane.b32.xlu0 %v350, 64
    %v353 = vpop.permute.xlu0 %352
    %v355 = vmul.f32 %v338, %v353
    %357 = vrot.lane.b32.xlu0 %v355, 64
    %v358 = vpop.permute.xlu0 %357
    %v360 = vadd.f32 %v344, %v358
    %v361 = vtanh.pop %v360
    %v362 = vsub.f32 1.0, %v338
    %364 = vrot.lane.b32.xlu0 %v361, 96
    %v365 = vpop.permute.xlu0 %364
    %v367 = vmul.f32 %v362, %v365
    %368 = vrot.lane.b32.xlu0 %v159, 32
    %v369 = vpop.permute.xlu0 %368
    %v371 = vmul.f32 %v338, %v369
    %v372 = vadd.f32 %v367, %v371
    %374 = vrot.lane.b32.xlu0 %v372, 96
    %v375 = vpop.permute.xlu0 %374
    %vm377 = vcmask 254976
    %378 = vst.msk [vmem:[#allocation13] sm:$0x3] %vm377, %v375
    %380 = vst.msk [vmem:[#allocation14] sm:$0x3] %vm377, %v269
    %s381 = scalar_lea.vmem [#allocation14], 2
    %382 = vst.msk [vmem:[%s381] sm:$0x3] %vm377, %v375
    // Predicated region
    $region74: #{tpu_custom_call.1} parent=1 // pred_check
      _
    $region75: #{tpu_custom_call.1} parent=1 // pred_check_branch
      %384 = sbr.rel (0) target = $region77
    $region76: #{tpu_custom_call.1} parent=1 // pred_region
      %386 = vsyncadd [#allocation4], 0
      %s388 = sshll.u32 [#allocation13], 4
      %s389 = int_to_ptr.vmem [resolvable:$true] %s388
      %s390 = sshll.u32 %s12, 4
      %s391 = int_to_ptr.hbm [resolvable:$true] %s390
      %393 = dma.vmem_to_hbm [thread:$0]  %s389, 32, %s391, [#allocation4]
    $region77: #{tpu_custom_call.1} parent=1 // pred_fallthru
      _
    // Predicated region
    $region78: #{tpu_custom_call.1} parent=1 // pred_check
      _
    $region79: #{tpu_custom_call.1} parent=1 // pred_check_branch
      %395 = sbr.rel (0) target = $region81
    $region80: #{tpu_custom_call.1} parent=1 // pred_region
      %397 = vsyncadd [#allocation15], 0
      %s398 = sshll.u32 [#allocation14], 4
      %s399 = int_to_ptr.vmem [resolvable:$true] %s398
      %s400 = sshll.u32 %s13, 4
      %s401 = int_to_ptr.hbm [resolvable:$true] %s400
      %406 = dma.vmem_to_hbm [thread:$0]  %s399, 64, %s401, [#allocation15], 32, 32, 2
    $region81: #{tpu_custom_call.1} parent=1 // pred_fallthru
      _
    // Predicated region
    $region82: #{tpu_custom_call.1} parent=1 // pred_check
      _
    $region83: #{tpu_custom_call.1} parent=1 // pred_check_branch
      %408 = sbr.rel (0) target = $region85
    $region84: #{tpu_custom_call.1} parent=1 // pred_region
      %410 = dma.done [#allocation4], 32
    $region85: #{tpu_custom_call.1} parent=1 // pred_fallthru
      _
    // Predicated region
    $region86: #{tpu_custom_call.1} parent=1 // pred_check
      _
    $region87: #{tpu_custom_call.1} parent=1 // pred_check_branch
      %412 = sbr.rel (0) target = $region89
    $region88: #{tpu_custom_call.1} parent=1 // pred_region
      %414 = dma.done [#allocation15], 64
    $region89: #{tpu_custom_call.1} parent=1 // pred_fallthru
      _
    %415 = vsyncpa [#allocation3], 1
    %416 = vsyncpa [#allocation6], 1
    %417 = vsyncpa [#allocation9], 1
    %418 = vsyncpa [#allocation12], 1
    %419 = vsyncpa [#allocation4], 1
    %420 = vsyncpa [#allocation15], 1

</llo_original>
